<compile_context>
chip_gen: v6e
topology: v6e:2x2x1
jax: 0.10.0
libtpu: 0.0.40
codegen_flags: <defaults>
</compile_context>

<pallas_src>
import math

import jax
import jax.numpy as jnp
from jax.experimental import pallas as pl
from jax.experimental.pallas import tpu as pltpu

_MIB = 1024 * 1024


def _round_up(x, m):
    return ((x + m - 1) // m) * m


def _cdiv(a, b):
    return (a + b - 1) // b


def _vmem_budgets():
    """Generation-aware (working_set_budget, scoped_vmem_limit) in bytes."""
    cap = None
    try:
        cap = getattr(pltpu.get_tpu_info(), "vmem_capacity_bytes", None)
    except Exception:
        cap = None
    if not cap or cap <= 0:
        cap = 64 * _MIB  # conservative (v7x-sized) fallback
    limit = min((cap * 3) // 4, 96 * _MIB)          # v5e/v6e: 96 MiB, v7x: 48 MiB
    budget = max(min(cap // 2, limit - 8 * _MIB), 16 * _MIB)
    return budget, limit


# ---------------------------------------------------------------------------
# Single-layer kernel
# ---------------------------------------------------------------------------
def siren_kernel(x_ref, wt_ref, b_ref, o_ref):
    # x_ref : (tile_b, dim_in)    VMEM
    # wt_ref: (dim_in, n_cols)    VMEM  (weight transposed, pre-scaled by w0)
    # b_ref : (1, n_cols)         VMEM  (bias pre-scaled by w0, f32)
    # o_ref : (tile_b, n_cols)    VMEM  (lane-dense: n_cols is a multiple of 128)
    a = x_ref[...].astype(wt_ref.dtype)      # in-kernel cast (no-op for f32 params)
    lin = jnp.dot(a, wt_ref[...], preferred_element_type=jnp.float32)
    # sin has no EUP path (VALU polynomial) -> keep the epilogue minimal.
    o_ref[...] = jnp.sin(lin + b_ref[...]).astype(o_ref.dtype)


def prepare_siren_params(weight, bias, w0, *, tile_n=None, param_dtype=jnp.float32,
                         vmem_budget_bytes=None):
    """One-time parameter prep (hoist out of the forward path).

    Folds w0 into weight/bias, transposes the weight to (dim_in, dim_out), and
    zero-pads dim_out to a lane-dense multiple of 128.  tile_n selection:
      * tile_n == padded dim_out -> forward uses the resident-weight 1-D batch
        grid (whole weight held in VMEM, x streamed exactly once).
      * otherwise forward tiles dim_out in blocks of tile_n (only needed for
        weights too large for VMEM); tile_n is made as large as the budget
        allows because redundant x reads scale with dim_out/tile_n.

    Returns (wt, bias_row, dim_out, tile_n).
    """
    dim_out, dim_in = weight.shape
    itemsize = jnp.dtype(param_dtype).itemsize
    if vmem_budget_bytes is None:
        vmem_budget_bytes, _ = _vmem_budgets()
    dim_out_128 = _round_up(dim_out, 128)
    if tile_n is None:
        # Resident if a (conservatively double-buffered) full weight fits in half the budget.
        if 2 * dim_in * dim_out_128 * itemsize <= vmem_budget_bytes // 2:
            tile_n = dim_out_128
        else:
            cols = (vmem_budget_bytes // 2) // max(1, 2 * dim_in * itemsize)
            tile_n = max(128, (cols // 128) * 128)
    assert tile_n % 128 == 0, "tile_n must be a multiple of 128 (lane-dense output)"
    dim_out_p = _round_up(dim_out, tile_n)

    wt = (w0 * weight).T.astype(param_dtype)               # (dim_in, dim_out)
    if bias is None:
        b = jnp.zeros((dim_out,), jnp.float32)
    else:
        b = (w0 * bias).astype(jnp.float32)                 # epilogue stays f32
    if dim_out_p != dim_out:
        wt = jnp.pad(wt, ((0, 0), (0, dim_out_p - dim_out)))
        b = jnp.pad(b, (0, dim_out_p - dim_out))
    return wt, b.reshape(1, dim_out_p), dim_out, tile_n


def _choose_tile_b(B, est_fn, *, row_align, budget, target):
    tile_b = min(target, _round_up(B, row_align))
    while tile_b > row_align and est_fn(tile_b) > budget:
        tile_b = max(row_align, _round_up(tile_b // 2, row_align))
    # Keep >=2 batch blocks whenever possible so v7x megacore feeds both TCs.
    if _cdiv(B, tile_b) < 2 and B > row_align:
        tile_b = max(row_align, _round_up(_cdiv(B, 2), row_align))
    return tile_b


def siren_forward(x, wt, bias_row, dim_out, tile_n, *, tile_b=None,
                  out_dtype=jnp.float32,
                  vmem_budget_bytes=None, vmem_limit_bytes=None):
    """Pallas Siren forward: sin(x @ wt + bias_row)[:, :dim_out].

    x: (B, dim_in).  wt/bias_row come from prepare_siren_params (w0 folded in,
    dim_out zero-padded).  If tile_n covers the whole padded dim_out, the weight
    stays resident in VMEM and the grid is 1-D over batch tiles (x streamed
    exactly once); otherwise a 2-D (n-outer, batch-inner) fallback grid is used.
    """
    B, dim_in = x.shape
    dim_in_w, dim_out_p = wt.shape
    assert dim_in == dim_in_w
    assert dim_out_p % tile_n == 0

    budget_default, limit_default = _vmem_budgets()
    if vmem_budget_bytes is None:
        vmem_budget_bytes = budget_default
    if vmem_limit_bytes is None:
        vmem_limit_bytes = limit_default

    x_bytes = jnp.dtype(x.dtype).itemsize
    w_bytes = jnp.dtype(wt.dtype).itemsize
    o_bytes = jnp.dtype(out_dtype).itemsize
    # bf16 packs 16 rows per sublane group -> 16-row alignment on the batch tile.
    row_align = 16 if min(x_bytes, w_bytes) < 4 else 8
    resident = (tile_n == dim_out_p)
    n_cols = dim_out_p if resident else tile_n

    def est(tb):
        return (2 * tb * dim_in * x_bytes           # double-buffered x blocks
                + 2 * tb * n_cols * o_bytes         # double-buffered out blocks
                + tb * n_cols * 4                   # f32 matmul/sin intermediate
                + 2 * dim_in * n_cols * w_bytes     # weight (conservatively x2)
                + 2 * n_cols * 4)                   # bias

    if tile_b is None:
        # Bigger VMEM (v5e/v6e) -> bigger batch tiles (fewer grid steps, closer to roofline).
        target = 2048 if vmem_budget_bytes >= 48 * _MIB else 1024
        tile_b = _choose_tile_b(B, est, row_align=row_align,
                                budget=vmem_budget_bytes, target=target)
    assert tile_b % row_align == 0, (
        f"tile_b must be a multiple of {row_align} for dtypes {x.dtype}/{wt.dtype}")

    B_p = _round_up(B, tile_b)
    if B_p != B:
        x = jnp.pad(x, ((0, B_p - B), (0, 0)))

    if resident:
        # 1-D batch grid: x streamed from HBM exactly once; weight/bias resident.
        grid = (B_p // tile_b,)
        in_specs = [
            pl.BlockSpec((tile_b, dim_in), lambda i: (i, 0)),
            pl.BlockSpec((dim_in, dim_out_p), lambda i: (0, 0)),
            pl.BlockSpec((1, dim_out_p), lambda i: (0, 0)),
        ]
        out_specs = pl.BlockSpec((tile_b, dim_out_p), lambda i: (i, 0))
        dim_sem = ("parallel",)
    else:
        # Fallback for weights too big to hold resident: dim_out blocks on the
        # OUTER axis, batch on the INNER axis.  tile_n was chosen as large as the
        # budget allows since x is re-streamed once per outer block.  (On v7x the
        # weight block could additionally be single-buffered - its block index
        # only changes on the outer axis - to reclaim VMEM for bigger tiles.)
        grid = (dim_out_p // tile_n, B_p // tile_b)
        in_specs = [
            pl.BlockSpec((tile_b, dim_in), lambda j, i: (i, 0)),
            pl.BlockSpec((dim_in, tile_n), lambda j, i: (0, j)),
            pl.BlockSpec((1, tile_n), lambda j, i: (0, j)),
        ]
        out_specs = pl.BlockSpec((tile_b, tile_n), lambda j, i: (i, j))
        dim_sem = ("parallel", "parallel")

    out = pl.pallas_call(
        siren_kernel,
        out_shape=jax.ShapeDtypeStruct((B_p, dim_out_p), out_dtype),
        grid_spec=pltpu.PrefetchScalarGridSpec(
            num_scalar_prefetch=0,
            grid=grid,
            in_specs=in_specs,
            out_specs=out_specs,
        ),
        compiler_params=pltpu.CompilerParams(
            dimension_semantics=dim_sem,
            vmem_limit_bytes=vmem_limit_bytes),
    )(x, wt, bias_row)

    # Slice away batch / dim_out padding (no-op slices when nothing was padded).
    return out[:B, :dim_out]


def siren_apply(x, weight, bias, w0, **kwargs):
    """Convenience: prep + forward (prep should normally be hoisted out)."""
    wt, brow, dim_out, tile_n = prepare_siren_params(weight, bias, w0)
    return siren_forward(x, wt, brow, dim_out, tile_n, **kwargs)


# ---------------------------------------------------------------------------
# Fused multi-layer Siren stack (activations never leave VMEM)
# ---------------------------------------------------------------------------
def prepare_siren_stack(layers, *, param_dtype=jnp.float32):
    """One-time prep for a fused stack of Siren layers.

    layers: sequence of (weight, bias_or_None, w0), weight (dim_out, dim_in),
    consecutive dims chaining (dim_in[l+1] == dim_out[l]).  Hidden dims are
    zero-padded to multiples of 128; padded activations are exactly sin(0)=0 and
    hit zero weight rows in the next layer, so padding never perturbs results.
    Returns (wts, bias_rows, final_dim_out).
    """
    wts, brows = [], []
    prev_out, prev_out_p = None, None
    final_dim_out = None
    for (weight, bias, w0) in layers:
        dim_out, dim_in = weight.shape
        if prev_out is not None:
            assert dim_in == prev_out, "layer dims must chain (dim_in == previous dim_out)"
        dim_out_p = _round_up(dim_out, 128)
        wt = (w0 * weight).T.astype(param_dtype)           # (dim_in, dim_out)
        b = (jnp.zeros((dim_out,), jnp.float32) if bias is None
             else (w0 * bias).astype(jnp.float32))
        wt = jnp.pad(wt, ((0, 0), (0, dim_out_p - dim_out)))
        b = jnp.pad(b, (0, dim_out_p - dim_out))
        if prev_out_p is not None and prev_out_p != dim_in:
            wt = jnp.pad(wt, ((0, prev_out_p - dim_in), (0, 0)))   # zero rows for padded inputs
        wts.append(wt)
        brows.append(b.reshape(1, dim_out_p))
        prev_out, prev_out_p = dim_out, dim_out_p
        final_dim_out = dim_out
    return wts, brows, final_dim_out


def _make_stack_kernel(n_layers):
    def kernel(*refs):
        x_ref = refs[0]
        wt_refs = refs[1:1 + n_layers]
        b_refs = refs[1 + n_layers:1 + 2 * n_layers]
        o_ref = refs[1 + 2 * n_layers]
        h = x_ref[...]
        for l in range(n_layers):       # static unroll; activations stay on-chip
            a = h.astype(wt_refs[l].dtype)
            lin = jnp.dot(a, wt_refs[l][...], preferred_element_type=jnp.float32)
            h = jnp.sin(lin + b_refs[l][...])
        o_ref[...] = h.astype(o_ref.dtype)
    return kernel


def siren_stack_forward(x, wts, bias_rows, final_dim_out, *, tile_b=None,
                        out_dtype=jnp.float32,
                        vmem_budget_bytes=None, vmem_limit_bytes=None):
    """Fused Siren stack: all layer weights resident in VMEM, only the network
    input and the final output are streamed through HBM."""
    B, d0 = x.shape
    n_layers = len(wts)
    assert d0 == wts[0].shape[0]
    dout_p = wts[-1].shape[1]

    budget_default, limit_default = _vmem_budgets()
    if vmem_budget_bytes is None:
        vmem_budget_bytes = budget_default
    if vmem_limit_bytes is None:
        vmem_limit_bytes = limit_default

    x_bytes = jnp.dtype(x.dtype).itemsize
    o_bytes = jnp.dtype(out_dtype).itemsize
    w_bytes_total = sum(2 * w.size * jnp.dtype(w.dtype).itemsize for w in wts)
    b_bytes_total = sum(2 * b.size * 4 for b in bias_rows)
    max_h = max(w.shape[1] for w in wts)
    row_align = 16 if (x_bytes < 4 or
                       any(jnp.dtype(w.dtype).itemsize < 4 for w in wts)) else 8

    def est(tb):
        return (2 * tb * d0 * x_bytes             # double-buffered input blocks
                + 2 * tb * dout_p * o_bytes       # double-buffered output blocks
                + 2 * tb * max_h * 4              # two live f32 activations per layer step
                + w_bytes_total + b_bytes_total)  # resident params

    if tile_b is None:
        target = 2048 if vmem_budget_bytes >= 48 * _MIB else 1024
        tile_b = _choose_tile_b(B, est, row_align=row_align,
                                budget=vmem_budget_bytes, target=target)
    assert tile_b % row_align == 0

    B_p = _round_up(B, tile_b)
    if B_p != B:
        x = jnp.pad(x, ((0, B_p - B), (0, 0)))

    in_specs = [pl.BlockSpec((tile_b, d0), lambda i: (i, 0))]
    in_specs += [pl.BlockSpec(w.shape, lambda i: (0, 0)) for w in wts]
    in_specs += [pl.BlockSpec(b.shape, lambda i: (0, 0)) for b in bias_rows]

    out = pl.pallas_call(
        _make_stack_kernel(n_layers),
        out_shape=jax.ShapeDtypeStruct((B_p, dout_p), out_dtype),
        grid_spec=pltpu.PrefetchScalarGridSpec(
            num_scalar_prefetch=0,
            grid=(B_p // tile_b,),
            in_specs=in_specs,
            out_specs=pl.BlockSpec((tile_b, dout_p), lambda i: (i, 0)),
        ),
        compiler_params=pltpu.CompilerParams(
            dimension_semantics=("parallel",),
            vmem_limit_bytes=vmem_limit_bytes),
    )(x, *wts, *bias_rows)

    return out[:B, :final_dim_out]


# ---------------------------------------------------------------------------
# Reference / init helpers and self-test
# ---------------------------------------------------------------------------
def init_siren_params(key, dim_in, dim_out, w0=1.0, c=6.0, is_first=False):
    """Deterministic re-implementation of Siren.init_ (uniform(-w_std, w_std))."""
    w_std = (1.0 / dim_in) if is_first else (math.sqrt(c / dim_in) / w0)
    k_w, _ = jax.random.split(key)
    weight = jax.random.uniform(
        k_w, (dim_out, dim_in), dtype=jnp.float32, minval=-w_std, maxval=w_std)
    # PyTorch reference leaves bias at zeros (init_ only touches weight).
    bias = jnp.zeros((dim_out,), dtype=jnp.float32)
    return weight, bias


def siren_reference(x, weight, bias, w0):
    return jnp.sin(w0 * (x @ weight.T + bias[None, :]))


if __name__ == "__main__":
    key = jax.random.PRNGKey(0)
    k_x1, k_p1, k_x2, k_p2, k_x3, k_p3 = jax.random.split(key, 6)
    w0 = 30.0  # typical Siren first-layer frequency

    # Case 1: small single layer -> resident-weight 1-D batch-grid fast path.
    B1, din1, dout1 = 8, 3, 32
    x1 = jax.random.normal(k_x1, (B1, din1), dtype=jnp.float32)
    w1, b1 = init_siren_params(k_p1, din1, dout1, w0=w0, c=6.0, is_first=True)
    wt1, brow1, dout1_, tn1 = prepare_siren_params(w1, b1, w0)
    out1 = jax.block_until_ready(siren_forward(x1, wt1, brow1, dout1_, tn1))
    ref1 = siren_reference(x1, w1, b1, w0)
    assert out1.shape == (B1, dout1)
    assert jnp.allclose(out1, ref1, atol=1e-4, rtol=1e-5), "case 1 mismatch"

    # Case 2: forced dim_out tiling (tile_n < padded dim_out) + non-multiple batch
    # -> exercises the 2-D fallback grid and batch/dim_out padding.
    B2, din2, dout2 = 300, 3, 200
    x2 = jax.random.normal(k_x2, (B2, din2), dtype=jnp.float32)
    w2, b2 = init_siren_params(k_p2, din2, dout2, w0=w0, c=6.0, is_first=True)
    wt2, brow2, dout2_, tn2 = prepare_siren_params(w2, b2, w0, tile_n=128)
    out2 = jax.block_until_ready(
        siren_forward(x2, wt2, brow2, dout2_, tn2, tile_b=128))
    ref2 = siren_reference(x2, w2, b2, w0)
    assert out2.shape == (B2, dout2)
    assert jnp.allclose(out2, ref2, atol=1e-4, rtol=1e-5), "case 2 mismatch"

    # Case 3: fused 3-layer Siren stack (weights resident, activations in VMEM).
    B3 = 64
    dims = [3, 32, 32, 16]
    ks = jax.random.split(k_p3, len(dims) - 1)
    layers = []
    for li in range(len(dims) - 1):
        wl, bl = init_siren_params(ks[li], dims[li], dims[li + 1],
                                   w0=w0, c=6.0, is_first=(li == 0))
        layers.append((wl, bl, w0))
    x3 = jax.random.normal(k_x3, (B3, dims[0]), dtype=jnp.float32)
    wts3, brows3, dout3 = prepare_siren_stack(layers)
    out3 = jax.block_until_ready(siren_stack_forward(x3, wts3, brows3, dout3))
    h = x3
    for (wl, bl, _) in layers:
        h = siren_reference(h, wl, bl, w0)
    assert out3.shape == (B3, dims[-1])
    # Stacked layers amplify per-layer matmul rounding (x ~||w0*W|| per layer).
    assert jnp.allclose(out3, h, atol=1e-3, rtol=1e-5), "case 3 mismatch"

    print("KERNEL_OK")
</pallas_src>

<mosaic_0001>
module attributes {stable_mosaic.version = 11 : i64} {
  func.func @siren_kernel(%arg0: i32, %arg1: memref<8x3xf32, #tpu.memory_space<vmem>>, %arg2: memref<3x128xf32, #tpu.memory_space<vmem>>, %arg3: memref<1x128xf32, #tpu.memory_space<vmem>>, %arg4: memref<8x128xf32, #tpu.memory_space<vmem>>) attributes {dimension_semantics = [#tpu.dimension_semantics<parallel>], iteration_bounds = array<i64: 1>, scalar_prefetch = 0 : i64, scratch_operands = 0 : i64, tpu.core_type = #tpu.core_type<tc>, window_params = [{transform_indices = @transform_0, window_bounds = array<i64: 8, 3>}, {pipeline_mode = #tpu.pipeline_mode<synchronous>, transform_indices = @transform_1, window_bounds = array<i64: 3, 128>}, {pipeline_mode = #tpu.pipeline_mode<synchronous>, transform_indices = @transform_2, window_bounds = array<i64: 1, 128>}, {transform_indices = @transform_3, window_bounds = array<i64: 8, 128>}]} {
    %c0 = arith.constant 0 : index
    %c0_0 = arith.constant 0 : index
    %0 = vector.load %arg1[%c0, %c0_0] : memref<8x3xf32, #tpu.memory_space<vmem>>, vector<8x3xf32>
    %c0_1 = arith.constant 0 : index
    %c0_2 = arith.constant 0 : index
    %1 = vector.load %arg2[%c0_1, %c0_2] : memref<3x128xf32, #tpu.memory_space<vmem>>, vector<3x128xf32>
    %cst = arith.constant dense<0.000000e+00> : vector<8x128xf32>
    %2 = tpu.matmul %0, %1, %cst {dimension_numbers = #tpu.dot_dimension_numbers<[1], [0], [0], [1], [0, 0, 1, 1], [], []>} : vector<8x3xf32>, vector<3x128xf32>, vector<8x128xf32> -> vector<8x128xf32>
    %c0_3 = arith.constant 0 : index
    %c0_4 = arith.constant 0 : index
    %3 = vector.load %arg3[%c0_3, %c0_4] : memref<1x128xf32, #tpu.memory_space<vmem>>, vector<1x128xf32>
    %4 = vector.broadcast %3 : vector<1x128xf32> to vector<8x128xf32>
    %5 = arith.addf %2, %4 : vector<8x128xf32>
    %6 = math.sin %5 : vector<8x128xf32>
    %c0_5 = arith.constant 0 : index
    %c0_6 = arith.constant 0 : index
    %7 = vector.load %arg4[%c0_5, %c0_6] : memref<8x128xf32, #tpu.memory_space<vmem>>, vector<8x128xf32>
    tpu.vector_store %arg4[%c0_5, %c0_6], %6 {strides = array<i32>} : memref<8x128xf32, #tpu.memory_space<vmem>>, vector<8x128xf32>,
    return
  }
  func.func @transform_0(%arg0: i32) -> (i32, i32) {
    %c0_i32 = arith.constant 0 : i32
    %c0_i32_0 = arith.constant 0 : i32
    return %arg0, %c0_i32 : i32, i32
  }
  func.func @transform_1(%arg0: i32) -> (i32, i32) {
    %c0_i32 = arith.constant 0 : i32
    %c0_i32_0 = arith.constant 0 : i32
    %c0_i32_1 = arith.constant 0 : i32
    return %c0_i32, %c0_i32_0 : i32, i32
  }
  func.func @transform_2(%arg0: i32) -> (i32, i32) {
    %c0_i32 = arith.constant 0 : i32
    %c0_i32_0 = arith.constant 0 : i32
    %c0_i32_1 = arith.constant 0 : i32
    return %c0_i32, %c0_i32_0 : i32, i32
  }
  func.func @transform_3(%arg0: i32) -> (i32, i32) {
    %c0_i32 = arith.constant 0 : i32
    %c0_i32_0 = arith.constant 0 : i32
    return %arg0, %c0_i32 : i32, i32
  }
}

</mosaic_0001>

<llo_original>
// kernel: tpu_custom_call.1
$region0: #{tpu_custom_call.1}
  #allocation0 [shape = 'u32[]', space=smem, size = 0x4, offset = 0x4, fixed_abs, tag = 'smem constant byte address 0x4 - core index']
  #allocation1 [shape = 'u32[144,128]{1,0:T(1,128)}', space=vmem, size = 0x12000, scoped, tag = 'internal scratch']
  %s0 = inlined_call_operand.vmem [shape: f32[8,3], index: 0, kind: input, shape index: {}]
  %s1 = inlined_call_operand.vmem [shape: f32[3,128], index: 1, kind: input, shape index: {}]
  %s2 = inlined_call_operand.vmem [shape: f32[1,128], index: 2, kind: input, shape index: {}]
  %s3 = inlined_call_operand.hbm [shape: f32[8,128], index: 3, kind: output, shape index: {}]
  %s4 = sld [smem:[#allocation0]]
  $region22: #{tpu_custom_call.1} parent=0
    _
  %s6 = ssub.s32 1, %s4
  %s7 = scalar_select 0, %s6, %s4
  $region1: #{tpu_custom_call.1} parent=0
    #allocation2 [shape = 'u8[4096]{0}', space=vmem, size = 0x1000, scoped, tag = 'output window, operand 0, single buffered']
    #allocation3 [shape = 's32[1]{0}', space=sflag, size = 0x4, scoped, tag = 'scoped memory for tpu_custom_call.1']
    %8 = vsyncpa [#allocation3], 0
    // Predicated region
    $region2: #{tpu_custom_call.1} parent=1 // pred_check
      _
    $region3: #{tpu_custom_call.1} parent=1 // pred_check_branch
      %10 = sbr.rel (0) target = $region5
    $region4: #{tpu_custom_call.1} parent=1 // pred_region
      _
    $region5: #{tpu_custom_call.1} parent=1 // pred_fallthru
      _
    // Predicated region
    $region6: #{tpu_custom_call.1} parent=1 // pred_check
      _
    $region7: #{tpu_custom_call.1} parent=1 // pred_check_branch
      %12 = sbr.rel (0) target = $region9
    $region8: #{tpu_custom_call.1} parent=1 // pred_region
      _
    $region9: #{tpu_custom_call.1} parent=1 // pred_fallthru
      _
    // Predicated region
    $region10: #{tpu_custom_call.1} parent=1 // pred_check
      _
    $region11: #{tpu_custom_call.1} parent=1 // pred_check_branch
      %14 = sbr.rel (0) target = $region13
    $region12: #{tpu_custom_call.1} parent=1 // pred_region
      _
    $region13: #{tpu_custom_call.1} parent=1 // pred_fallthru
      _
    %v15 = vld [vmem:[%s0] sm:$0xff]
    %v16 = vld [vmem:[%s1] sm:$0x7]
    %v17 = vld [vmem:[%s2] sm:$0x1]
    %v19 = vlaneseq
    %v20 = vshrl.u32 %v19, 7
    %v21 = vsub.s32 0, %v20
    %v22 = vrot.slane %v17, %v21
    %vm24 = vcmask 23552
    %v26 = vsel %vm24, %v15, 0
    %vm28 = vcmask 1042432
    %v30 = vsel %vm28, %v16, 0
    %32 = vmatprep.subr.mxu0 0.0
    %33 = vmatpush1.msra.mxu0 0.0
    %34 = vmatprep.subr.mxu0 0.0
    %35 = vmatpush1.msra.mxu0 0.0
    %36 = vmatprep.subr.mxu0 0.0
    %37 = vmatpush1.msra.mxu0 0.0
    %38 = vmatprep.subr.mxu0 0.0
    %39 = vmatpush1.msra.mxu0 0.0
    %40 = vmatprep.subr.mxu0 0.0
    %41 = vmatpush1.msra.mxu0 0.0
    %42 = vmatprep.subr.mxu0 0.0
    %43 = vmatpush1.msra.mxu0 0.0
    %44 = vmatprep.subr.mxu0 0.0
    %45 = vmatpush1.msra.mxu0 0.0
    %46 = vmatprep.subr.mxu0 0.0
    %47 = vmatpush1.msra.mxu0 0.0
    %48 = vmatprep.subr.mxu0 0.0
    %49 = vmatpush1.msra.mxu0 0.0
    %50 = vmatprep.subr.mxu0 0.0
    %51 = vmatpush1.msra.mxu0 0.0
    %52 = vmatprep.subr.mxu0 0.0
    %53 = vmatpush1.msra.mxu0 0.0
    %54 = vmatprep.subr.mxu0 0.0
    %55 = vmatpush1.msra.mxu0 0.0
    %56 = vmatprep.subr.mxu0 0.0
    %57 = vmatpush1.msra.mxu0 0.0
    %58 = vmatprep.subr.mxu0 0.0
    %59 = vmatpush1.msra.mxu0 0.0
    %60 = vmatprep.subr.mxu0 0.0
    %61 = vmatpush1.msra.mxu0 0.0
    %62 = vmatprep.subr.mxu0 0.0
    %63 = vmatpush1.msra.mxu0 %v30
    %64 = vmatprep.subr.mxu0 0.0
    %65 = vmatpush2.msra.mxu0 0.0
    %66 = vmatprep.subr.mxu0 0.0
    %67 = vmatpush2.msra.mxu0 0.0
    %68 = vmatprep.subr.mxu0 0.0
    %69 = vmatpush2.msra.mxu0 0.0
    %70 = vmatprep.subr.mxu0 0.0
    %71 = vmatpush2.msra.mxu0 0.0
    %72 = vmatprep.subr.mxu0 0.0
    %73 = vmatpush2.msra.mxu0 0.0
    %74 = vmatprep.subr.mxu0 0.0
    %75 = vmatpush2.msra.mxu0 0.0
    %76 = vmatprep.subr.mxu0 0.0
    %77 = vmatpush2.msra.mxu0 0.0
    %78 = vmatprep.subr.mxu0 0.0
    %79 = vmatpush2.msra.mxu0 0.0
    %80 = vmatprep.subr.mxu0 0.0
    %81 = vmatpush2.msra.mxu0 0.0
    %82 = vmatprep.subr.mxu0 0.0
    %83 = vmatpush2.msra.mxu0 0.0
    %84 = vmatprep.subr.mxu0 0.0
    %85 = vmatpush2.msra.mxu0 0.0
    %86 = vmatprep.subr.mxu0 0.0
    %87 = vmatpush2.msra.mxu0 0.0
    %88 = vmatprep.subr.mxu0 0.0
    %89 = vmatpush2.msra.mxu0 0.0
    %90 = vmatprep.subr.mxu0 0.0
    %91 = vmatpush2.msra.mxu0 0.0
    %92 = vmatprep.subr.mxu0 0.0
    %93 = vmatpush2.msra.mxu0 0.0
    %94 = vmatprep.subr.mxu0 0.0
    %95 = vmatpush2.msra.mxu0 0.0
    %96 = vmatprep.mubr.f32.mxu0 0.0
    %97 = vmatmul.mubr.f32.gmra.mxu0 %v26
    %v98 = vpop.f32.mrf.mxu0
    %v99 = vadd.f32 %v22, %v98
    %v100 = vpop.f32.mrf.mxu0
    %101 = vdwg.mxu0
    %v102 = vand.u32 2147483647, %v99
    %vm103 = vcmp.le.f32.partialorder %v102, 0.7853982
    %vm104 = vcmp.lt.s32.totalorder %v99, 0
    %v105 = vand.u32 %v99, 2139095040
    %v106 = vshrl.u32 %v105, 23
    %v107 = vsub.s32 %v106, 127
    %v108 = vand.u32 2147483647, %v99
    %v109 = vand.u32 %v108, 8388607
    %v110 = vor.u32 %v109, 8388608
    %v111 = vsub.s32 0, %v110
    %v112 = vadd.s32 %v107, 1
    %vm113 = vcmp.gt.s32.totalorder %v112, 0
    %v114 = vsel %vm113, %v112, 0
    %v115 = vshrl.u32 %v114, 5
    %v116 = vand.u32 %v114, 31
    %v117 = vsub.s32 32, %v116
    %v118 = vshrl.u32 683565275, %v117
    %v119 = vshll.u32 683565275, %v116
    %v120 = vshrl.u32 2475754826, %v117
    %v121 = vor.u32 %v119, %v120
    %v122 = vshll.u32 2475754826, %v116
    %v123 = vshrl.u32 2131351028, %v117
    %v124 = vor.u32 %v122, %v123
    %v125 = vshll.u32 2131351028, %v116
    %v126 = vshrl.u32 2102212464, %v117
    %v127 = vor.u32 %v125, %v126
    %v128 = vshll.u32 2102212464, %v116
    %v129 = vshrl.u32 920167782, %v117
    %v130 = vor.u32 %v128, %v129
    %v131 = vshll.u32 920167782, %v116
    %v132 = vshrl.u32 1326507024, %v117
    %v133 = vor.u32 %v131, %v132
    %vm134 = vcmp.lt.s32.totalorder %v115, 1
    %vm135 = vcmp.lt.s32.totalorder %v115, 2
    %vm136 = vcmp.lt.s32.totalorder %v115, 3
    %vm137 = vcmp.lt.s32.totalorder %v115, 4
    %v138 = vsel %vm134, %v118, %v121
    %v139 = vsel %vm137, %v127, 2102212464
    %v140 = vsel %vm136, %v124, %v139
    %v141 = vsel %vm135, %v138, %v140
    %v142 = vsel %vm134, %v121, %v124
    %v143 = vsel %vm137, %v130, 920167782
    %v144 = vsel %vm136, %v127, %v143
    %v145 = vsel %vm135, %v142, %v144
    %v146 = vsel %vm134, %v124, %v127
    %v147 = vsel %vm137, %v133, 1326507024
    %v148 = vsel %vm136, %v130, %v147
    %v149 = vsel %vm135, %v146, %v148
    %v150 = vshll.u32 %v110, 8
    %v151 = vmul.u32.u64.compose %v150, %v149
    %v152 = vextract.low.u32 %v151
    %v153 = vextract.high.u32 %v151
    %v154 = vmul.u32.u64.compose %v150, %v145
    %v155 = vextract.low.u32 %v154
    %v156 = vextract.high.u32 %v154
    %v157 = vmul.u32 %v150, %v141
    %v158 = vadd.s32 %v153, %v155
    %vm159 = vc.u32 %v153, %v155
    %v160 = vadd.s32 %v156, 1
    %v161 = vsel %vm159, %v160, %v156
    %v162 = vadd.s32 %v157, %v161
    %v163 = vadd.s32 %v162, 536870912
    %v164 = vshrl.u32 %v163, 30
    %v165 = vshll.u32 %v164, 30
    %v166 = vsub.s32 %v162, %v165
    %vm167 = vcmp.lt.s32.totalorder %v166, 0
    %v168 = vsub.s32 0, %v166
    %v169 = vsel %vm167, %v168, %v166
    %v170 = vclz %v169
    %v171 = vsub.s32 %v170, 2
    %vm172 = vcmp.gt.s32.totalorder 0, %v171
    %v173 = vsel %vm172, 0, %v171
    %v174 = vsub.s32 32, %v173
    %v175 = vshll.u32 %v166, %v173
    %v176 = vshrl.u32 %v158, %v174
    %v177 = vor.u32 %v175, %v176
    %v178 = vsub.s32 4294967266, %v173
    %v179 = vadd.s32 %v178, 127
    %v180 = vshll.u32 %v179, 23
    %v181 = vor.u32 4788187, %v180
    %v182 = vand.u32 2147483647, %v181
    %v184 = vcvt.s32.f32 %v177
    %v185 = vmul.f32 %v184, %v182
    %v186 = vxor.u32 %v185, 2147483648
    %v187 = vsel %vm104, %v186, %v185
    %v188 = vsub.s32 4, %v164
    %v189 = vsel %vm104, %v188, %v164
    %v190 = vsel %vm103, %v99, %v187
    %v191 = vsel %vm103, 0, %v189
    %v192 = vcosq.f32.pop %v190
    %v193 = vsinq.f32.pop %v190
    %vm194 = vweird.f32 %v99
    %v195 = vadd.s32 %v191, 3
    %v196 = vand.u32 %v195, 3
    %vm197 = vcmp.lt.s32.totalorder %v196, 2
    %vm198 = vcmp.eq.s32.totalorder %v196, 0
    %v199 = vxor.u32 %v193, 2147483648
    %v200 = vsel %vm198, %v192, %v199
    %vm201 = vcmp.eq.s32.totalorder %v196, 2
    %v202 = vxor.u32 %v192, 2147483648
    %v203 = vsel %vm201, %v202, %v193
    %v204 = vsel %vm197, %v200, %v203
    %v205 = vsel %vm194, nan, %v204
    %206 = vst [vmem:[#allocation2] sm:$0xff] %v205
    // Predicated region
    $region14: #{tpu_custom_call.1} parent=1 // pred_check
      _
    $region15: #{tpu_custom_call.1} parent=1 // pred_check_branch
      %208 = sbr.rel (0) target = $region17
    $region16: #{tpu_custom_call.1} parent=1 // pred_region
      %s210 = ssub.s32 128, 128
      %211 = vsyncadd [#allocation3], %s210
      %s213 = sshll.u32 [#allocation2], 4
      %s214 = int_to_ptr.vmem [resolvable:$true] %s213
      %216 = dma.vmem_to_hbm [thread:$0]  %s214, 128, %s3, [#allocation3]
    $region17: #{tpu_custom_call.1} parent=1 // pred_fallthru
      _
    // Predicated region
    $region18: #{tpu_custom_call.1} parent=1 // pred_check
      _
    $region19: #{tpu_custom_call.1} parent=1 // pred_check_branch
      %218 = sbr.rel (0) target = $region21
    $region20: #{tpu_custom_call.1} parent=1 // pred_region
      %219 = dma.done [#allocation3], 128
    $region21: #{tpu_custom_call.1} parent=1 // pred_fallthru
      _
    %220 = vsyncpa [#allocation3], 1

</llo_original>
